<compile_context>
chip_gen: v6e
topology: v6e:2x2x1
jax: 0.10.0
libtpu: 0.0.40
codegen_flags: <defaults>
</compile_context>

<pallas_src>
import jax
import jax.numpy as jnp
from jax.experimental import pallas as pl
from jax.experimental.pallas import tpu as pltpu


# ----------------------------- helpers ---------------------------------------

def _round_up(x, m):
    return ((x + m - 1) // m) * m


def _pick_divisor_tile(total, granule, cap):
    """Largest multiple of `granule` that divides `total` and is <= cap."""
    best = granule
    t = granule
    while t <= min(total, cap):
        if total % t == 0:
            best = t
        t += granule
    return best


def _pick_m_tile(batch, cap=256):
    """Multiple-of-8 batch tile that minimizes padding of `batch` (ties -> larger)."""
    b8 = _round_up(max(batch, 1), 8)
    if b8 <= cap:
        return b8
    best_tm, best_pad = 8, None
    tm = 8
    while tm <= cap:
        pad = _round_up(batch, tm) - batch
        if best_pad is None or pad < best_pad or (pad == best_pad and tm > best_tm):
            best_tm, best_pad = tm, pad
        tm += 8
    return best_tm


# ----------------------------- kernels ----------------------------------------

def _linear_kernel(x_ref, w_ref, b_ref, o_ref):
    """y = x @ W^T + b with the f32 output tile used directly as the accumulator.

    Grid is (M, N, K), K innermost ("arbitrary"); the output BlockSpec ignores k so
    o_ref stays resident across the whole K loop. Bias is written once at k == 0,
    then partial MXU products accumulate in place (no scratch, no finalize copy).
    """
    k = pl.program_id(2)

    @pl.when(k == 0)
    def _init():
        o_ref[...] = jnp.broadcast_to(b_ref[...], o_ref.shape)

    o_ref[...] += jnp.dot(
        x_ref[...], w_ref[...], preferred_element_type=jnp.float32
    )


def _linear_kernel_single_block(x_ref, w_ref, b_ref, o_ref):
    """Fast path when the whole (padded) problem fits in one grid step."""
    o_ref[...] = (
        jnp.dot(x_ref[...], w_ref[...], preferred_element_type=jnp.float32)
        + b_ref[...]
    )


# ----------------------------- wrapper ----------------------------------------

def prepare_cnn_server_params(weight, bias, compute_dtype=jnp.float32):
    """One-time parameter prep (do at model load, NOT per forward call).

    weight: [C, D] (PyTorch nn.Linear convention), bias: [C].
    Returns W^T padded to [D_pad, C_pad] (lane granule 128) in `compute_dtype`,
    bias padded to [1, C_pad] in f32, and the true class count C.
    """
    C, D = weight.shape
    D_pad = _round_up(D, 128)
    C_pad = _round_up(C, 128)
    w_t = jnp.pad(weight.T, ((0, D_pad - D), (0, C_pad - C))).astype(compute_dtype)
    b_p = jnp.pad(bias, (0, C_pad - C)).astype(jnp.float32).reshape(1, C_pad)
    return w_t, b_p, C


def _linear_forward_padded(x_p, w_t, b_p, tm, tn, tk):
    M_pad, K_pad = x_p.shape
    _, N_pad = w_t.shape
    grid = (M_pad // tm, N_pad // tn, K_pad // tk)

    cost = pl.CostEstimate(
        flops=2 * M_pad * N_pad * K_pad,
        transcendentals=0,
        bytes_accessed=(
            x_p.size * x_p.dtype.itemsize
            + w_t.size * w_t.dtype.itemsize
            + M_pad * N_pad * 4
        ),
    )

    kernel = _linear_kernel_single_block if grid == (1, 1, 1) else _linear_kernel

    return pl.pallas_call(
        kernel,
        out_shape=jax.ShapeDtypeStruct((M_pad, N_pad), jnp.float32),
        grid=grid,
        in_specs=[
            pl.BlockSpec((tm, tk), lambda i, j, k: (i, k)),   # x tile
            pl.BlockSpec((tk, tn), lambda i, j, k: (k, j)),   # W^T tile ([K, N])
            pl.BlockSpec((1, tn), lambda i, j, k: (0, j)),    # bias tile
        ],
        out_specs=pl.BlockSpec((tm, tn), lambda i, j, k: (i, j)),
        compiler_params=pltpu.CompilerParams(
            dimension_semantics=("parallel", "parallel", "arbitrary")
        ),
        cost_estimate=cost,
    )(x_p, w_t, b_p)


def make_cnn_server_forward(weight, bias, compute_dtype=jnp.float32):
    """Build a jitted forward: x [B, D] -> logits [B, num_classes] (f32)."""
    w_t, b_p, num_classes = prepare_cnn_server_params(weight, bias, compute_dtype)
    D_pad, C_pad = w_t.shape

    # Tile sizes are divisors of the (granule-)padded extents, so no extra padding
    # to tile multiples is ever introduced.
    tk = _pick_divisor_tile(D_pad, 128, 1024)
    tn = _pick_divisor_tile(C_pad, 128, 512)

    @jax.jit
    def forward(x):
        B, D = x.shape
        tm = _pick_m_tile(B)                      # static under jit
        M_pad = _round_up(B, tm)
        x_p = jnp.pad(x, ((0, M_pad - B), (0, D_pad - D))).astype(compute_dtype)
        out = _linear_forward_padded(x_p, w_t, b_p, tm, tn, tk)
        return out[:B, :num_classes]

    return forward


def reference_forward(x, weight, bias):
    return x @ weight.T + bias


if __name__ == "__main__":
    # Sizes consistent with the module: n_client=2, client_output_size=128
    # -> in_features = 256; num_classes=10; batch=2.
    n_client = 2
    client_output_size = 128
    num_classes = 10
    batch = 2
    in_features = n_client * client_output_size

    key = jax.random.PRNGKey(0)
    kx, kw, kb = jax.random.split(key, 3)

    x = jax.random.normal(kx, (batch, in_features), dtype=jnp.float32)
    bound = 1.0 / jnp.sqrt(in_features)
    weight = jax.random.uniform(
        kw, (num_classes, in_features), dtype=jnp.float32, minval=-bound, maxval=bound
    )
    bias = jax.random.uniform(
        kb, (num_classes,), dtype=jnp.float32, minval=-bound, maxval=bound
    )

    forward = make_cnn_server_forward(weight, bias)  # weight prep happens ONCE here
    out = jax.block_until_ready(forward(x))

    ref = reference_forward(x, weight, bias)
    assert out.shape == (batch, num_classes)
    assert jnp.allclose(out, ref, atol=1e-5, rtol=1e-5), "mismatch vs reference"

    print("KERNEL_OK")
</pallas_src>

<mosaic_0001>
module attributes {stable_mosaic.version = 11 : i64} {
  func.func @_linear_kernel_single_block(%arg0: i32, %arg1: i32, %arg2: i32, %arg3: memref<8x256xf32, #tpu.memory_space<vmem>>, %arg4: memref<256x128xf32, #tpu.memory_space<vmem>>, %arg5: memref<1x128xf32, #tpu.memory_space<vmem>>, %arg6: memref<8x128xf32, #tpu.memory_space<vmem>>) attributes {dimension_semantics = [#tpu.dimension_semantics<parallel>, #tpu.dimension_semantics<parallel>, #tpu.dimension_semantics<arbitrary>], iteration_bounds = array<i64: 1, 1, 1>, scalar_prefetch = 0 : i64, scratch_operands = 0 : i64, tpu.core_type = #tpu.core_type<tc>, window_params = [{transform_indices = @transform_0, window_bounds = array<i64: 8, 256>}, {transform_indices = @transform_1, window_bounds = array<i64: 256, 128>}, {transform_indices = @transform_2, window_bounds = array<i64: 1, 128>}, {transform_indices = @transform_3, window_bounds = array<i64: 8, 128>}]} {
    %c0 = arith.constant 0 : index
    %c0_0 = arith.constant 0 : index
    %0 = vector.load %arg3[%c0, %c0_0] : memref<8x256xf32, #tpu.memory_space<vmem>>, vector<8x256xf32>
    %c0_1 = arith.constant 0 : index
    %c0_2 = arith.constant 0 : index
    %1 = vector.load %arg4[%c0_1, %c0_2] : memref<256x128xf32, #tpu.memory_space<vmem>>, vector<256x128xf32>
    %cst = arith.constant dense<0.000000e+00> : vector<8x128xf32>
    %2 = tpu.matmul %0, %1, %cst {dimension_numbers = #tpu.dot_dimension_numbers<[1], [0], [0], [1], [0, 0, 1, 1], [], []>} : vector<8x256xf32>, vector<256x128xf32>, vector<8x128xf32> -> vector<8x128xf32>
    %c0_3 = arith.constant 0 : index
    %c0_4 = arith.constant 0 : index
    %3 = vector.load %arg5[%c0_3, %c0_4] : memref<1x128xf32, #tpu.memory_space<vmem>>, vector<1x128xf32>
    %4 = vector.broadcast %3 : vector<1x128xf32> to vector<8x128xf32>
    %5 = arith.addf %2, %4 : vector<8x128xf32>
    %c0_5 = arith.constant 0 : index
    %c0_6 = arith.constant 0 : index
    %6 = vector.load %arg6[%c0_5, %c0_6] : memref<8x128xf32, #tpu.memory_space<vmem>>, vector<8x128xf32>
    tpu.vector_store %arg6[%c0_5, %c0_6], %5 {strides = array<i32>} : memref<8x128xf32, #tpu.memory_space<vmem>>, vector<8x128xf32>,
    return
  }
  func.func @transform_0(%arg0: i32, %arg1: i32, %arg2: i32) -> (i32, i32) {
    %c0_i32 = arith.constant 0 : i32
    return %arg0, %arg2 : i32, i32
  }
  func.func @transform_1(%arg0: i32, %arg1: i32, %arg2: i32) -> (i32, i32) {
    %c0_i32 = arith.constant 0 : i32
    return %arg2, %arg1 : i32, i32
  }
  func.func @transform_2(%arg0: i32, %arg1: i32, %arg2: i32) -> (i32, i32) {
    %c0_i32 = arith.constant 0 : i32
    %c0_i32_0 = arith.constant 0 : i32
    return %c0_i32, %arg1 : i32, i32
  }
  func.func @transform_3(%arg0: i32, %arg1: i32, %arg2: i32) -> (i32, i32) {
    %c0_i32 = arith.constant 0 : i32
    return %arg0, %arg1 : i32, i32
  }
}

</mosaic_0001>

<llo_original>
// kernel: forward.1
$region0: #{forward.1}
  #allocation0 [shape = 'u32[]', space=smem, size = 0x4, offset = 0x4, fixed_abs, tag = 'smem constant byte address 0x4 - core index']
  #allocation1 [shape = 'u32[144,128]{1,0:T(1,128)}', space=vmem, size = 0x12000, scoped, tag = 'internal scratch']
  %s0 = inlined_call_operand.vmem [shape: f32[8,256], index: 0, kind: input, shape index: {}]
  %s1 = inlined_call_operand.hbm [shape: f32[256,128], index: 1, kind: input, shape index: {}]
  %s2 = inlined_call_operand.vmem [shape: f32[1,128], index: 2, kind: input, shape index: {}]
  %s3 = inlined_call_operand.vmem [shape: f32[8,128], index: 3, kind: output, shape index: {}]
  %s4 = sld [smem:[#allocation0]]
  $region26: #{forward.1} parent=0
    _
  %s6 = ssub.s32 1, %s4
  %s7 = scalar_select 0, %s6, %s4
  $region1: #{forward.1} parent=0
    #allocation2 [shape = 'u8[131072]{0}', space=vmem, size = 0x20000, scoped, tag = 'input window, operand 1, single buffered']
    #allocation3 [shape = 's32[1]{0}', space=sflag, size = 0x4, scoped, tag = 'scoped memory for forward.1']
    %8 = vsyncpa [#allocation3], 0
    // Predicated region
    $region2: #{forward.1} parent=1 // pred_check
      _
    $region3: #{forward.1} parent=1 // pred_check_branch
      %10 = sbr.rel (0) target = $region5
    $region4: #{forward.1} parent=1 // pred_region
      _
    $region5: #{forward.1} parent=1 // pred_fallthru
      _
    // Predicated region
    $region6: #{forward.1} parent=1 // pred_check
      _
    $region7: #{forward.1} parent=1 // pred_check_branch
      %12 = sbr.rel (0) target = $region9
    $region8: #{forward.1} parent=1 // pred_region
      %s14 = ssub.s32 4096, 4096
      %15 = vsyncadd [#allocation3], %s14
      %s16 = sshll.u32 [#allocation2], 4
      %s17 = int_to_ptr.vmem [resolvable:$true] %s16
      %22 = dma.hbm_to_vmem [thread:$0]  %s1, 4096, %s17, [#allocation3], 128, 128, 8
    $region9: #{forward.1} parent=1 // pred_fallthru
      _
    // Predicated region
    $region10: #{forward.1} parent=1 // pred_check
      _
    $region11: #{forward.1} parent=1 // pred_check_branch
      %24 = sbr.rel (0) target = $region13
    $region12: #{forward.1} parent=1 // pred_region
      _
    $region13: #{forward.1} parent=1 // pred_fallthru
      _
    // Predicated region
    $region14: #{forward.1} parent=1 // pred_check
      _
    $region15: #{forward.1} parent=1 // pred_check_branch
      %26 = sbr.rel (0) target = $region17
    $region16: #{forward.1} parent=1 // pred_region
      %27 = dma.done [#allocation3], 4096
    $region17: #{forward.1} parent=1 // pred_fallthru
      _
    %v28 = vld [vmem:[%s0] sm:$0xff]
    %v29 = vld [vmem:[%s0 + $0x8] sm:$0xff]
    %v30 = vld [vmem:[#allocation2] sm:$0xff]
    %v31 = vld [vmem:[#allocation2 + $0x8] sm:$0xff]
    %v32 = vld [vmem:[#allocation2 + $0x10] sm:$0xff]
    %v33 = vld [vmem:[#allocation2 + $0x18] sm:$0xff]
    %v34 = vld [vmem:[#allocation2 + $0x20] sm:$0xff]
    %v35 = vld [vmem:[#allocation2 + $0x28] sm:$0xff]
    %v36 = vld [vmem:[#allocation2 + $0x30] sm:$0xff]
    %v37 = vld [vmem:[#allocation2 + $0x38] sm:$0xff]
    %v38 = vld [vmem:[#allocation2 + $0x40] sm:$0xff]
    %v39 = vld [vmem:[#allocation2 + $0x48] sm:$0xff]
    %v40 = vld [vmem:[#allocation2 + $0x50] sm:$0xff]
    %v41 = vld [vmem:[#allocation2 + $0x58] sm:$0xff]
    %v42 = vld [vmem:[#allocation2 + $0x60] sm:$0xff]
    %v43 = vld [vmem:[#allocation2 + $0x68] sm:$0xff]
    %v44 = vld [vmem:[#allocation2 + $0x70] sm:$0xff]
    %v45 = vld [vmem:[#allocation2 + $0x78] sm:$0xff]
    %v46 = vld [vmem:[#allocation2 + $0x80] sm:$0xff]
    %v47 = vld [vmem:[#allocation2 + $0x88] sm:$0xff]
    %v48 = vld [vmem:[#allocation2 + $0x90] sm:$0xff]
    %v49 = vld [vmem:[#allocation2 + $0x98] sm:$0xff]
    %v50 = vld [vmem:[#allocation2 + $0xa0] sm:$0xff]
    %v51 = vld [vmem:[#allocation2 + $0xa8] sm:$0xff]
    %v52 = vld [vmem:[#allocation2 + $0xb0] sm:$0xff]
    %v53 = vld [vmem:[#allocation2 + $0xb8] sm:$0xff]
    %v54 = vld [vmem:[#allocation2 + $0xc0] sm:$0xff]
    %v55 = vld [vmem:[#allocation2 + $0xc8] sm:$0xff]
    %v56 = vld [vmem:[#allocation2 + $0xd0] sm:$0xff]
    %v57 = vld [vmem:[#allocation2 + $0xd8] sm:$0xff]
    %v58 = vld [vmem:[#allocation2 + $0xe0] sm:$0xff]
    %v59 = vld [vmem:[#allocation2 + $0xe8] sm:$0xff]
    %v60 = vld [vmem:[#allocation2 + $0xf0] sm:$0xff]
    %v61 = vld [vmem:[#allocation2 + $0xf8] sm:$0xff]
    %v62 = vld [vmem:[%s2] sm:$0x1]
    %v64 = vlaneseq
    %v65 = vshrl.u32 %v64, 7
    %v66 = vsub.s32 0, %v65
    %v67 = vrot.slane %v62, %v66
    %69 = vmatprep.subr.mxu0 0.0
    %70 = vmatpush1.msra.mxu0 %v45
    %71 = vmatprep.subr.mxu0 0.0
    %72 = vmatpush1.msra.mxu0 %v44
    %73 = vmatprep.subr.mxu0 0.0
    %74 = vmatpush1.msra.mxu0 %v43
    %75 = vmatprep.subr.mxu0 0.0
    %76 = vmatpush1.msra.mxu0 %v42
    %77 = vmatprep.subr.mxu0 0.0
    %78 = vmatpush1.msra.mxu0 %v41
    %79 = vmatprep.subr.mxu0 0.0
    %80 = vmatpush1.msra.mxu0 %v40
    %81 = vmatprep.subr.mxu0 0.0
    %82 = vmatpush1.msra.mxu0 %v39
    %83 = vmatprep.subr.mxu0 0.0
    %84 = vmatpush1.msra.mxu0 %v38
    %85 = vmatprep.subr.mxu0 0.0
    %86 = vmatpush1.msra.mxu0 %v37
    %87 = vmatprep.subr.mxu0 0.0
    %88 = vmatpush1.msra.mxu0 %v36
    %89 = vmatprep.subr.mxu0 0.0
    %90 = vmatpush1.msra.mxu0 %v35
    %91 = vmatprep.subr.mxu0 0.0
    %92 = vmatpush1.msra.mxu0 %v34
    %93 = vmatprep.subr.mxu0 0.0
    %94 = vmatpush1.msra.mxu0 %v33
    %95 = vmatprep.subr.mxu0 0.0
    %96 = vmatpush1.msra.mxu0 %v32
    %97 = vmatprep.subr.mxu0 0.0
    %98 = vmatpush1.msra.mxu0 %v31
    %99 = vmatprep.subr.mxu0 0.0
    %100 = vmatpush1.msra.mxu0 %v30
    %101 = vmatprep.subr.mxu0 0.0
    %102 = vmatpush2.msra.mxu0 %v61
    %103 = vmatprep.subr.mxu0 0.0
    %104 = vmatpush2.msra.mxu0 %v60
    %105 = vmatprep.subr.mxu0 0.0
    %106 = vmatpush2.msra.mxu0 %v59
    %107 = vmatprep.subr.mxu0 0.0
    %108 = vmatpush2.msra.mxu0 %v58
    %109 = vmatprep.subr.mxu0 0.0
    %110 = vmatpush2.msra.mxu0 %v57
    %111 = vmatprep.subr.mxu0 0.0
    %112 = vmatpush2.msra.mxu0 %v56
    %113 = vmatprep.subr.mxu0 0.0
    %114 = vmatpush2.msra.mxu0 %v55
    %115 = vmatprep.subr.mxu0 0.0
    %116 = vmatpush2.msra.mxu0 %v54
    %117 = vmatprep.subr.mxu0 0.0
    %118 = vmatpush2.msra.mxu0 %v53
    %119 = vmatprep.subr.mxu0 0.0
    %120 = vmatpush2.msra.mxu0 %v52
    %121 = vmatprep.subr.mxu0 0.0
    %122 = vmatpush2.msra.mxu0 %v51
    %123 = vmatprep.subr.mxu0 0.0
    %124 = vmatpush2.msra.mxu0 %v50
    %125 = vmatprep.subr.mxu0 0.0
    %126 = vmatpush2.msra.mxu0 %v49
    %127 = vmatprep.subr.mxu0 0.0
    %128 = vmatpush2.msra.mxu0 %v48
    %129 = vmatprep.subr.mxu0 0.0
    %130 = vmatpush2.msra.mxu0 %v47
    %131 = vmatprep.subr.mxu0 0.0
    %132 = vmatpush2.msra.mxu0 %v46
    %133 = vmatprep.mubr.f32.mxu0 %v29
    %134 = vmatmul.mubr.f32.gmra.mxu0 %v28
    %v135 = vpop.f32.mrf.mxu0
    %v136 = vadd.f32 %v67, %v135
    %v137 = vpop.f32.mrf.mxu0
    %138 = vdwg.mxu0
    %139 = vst [vmem:[%s3] sm:$0xff] %v136
    // Predicated region
    $region18: #{forward.1} parent=1 // pred_check
      _
    $region19: #{forward.1} parent=1 // pred_check_branch
      %141 = sbr.rel (0) target = $region21
    $region20: #{forward.1} parent=1 // pred_region
      _
    $region21: #{forward.1} parent=1 // pred_fallthru
      _
    // Predicated region
    $region22: #{forward.1} parent=1 // pred_check
      _
    $region23: #{forward.1} parent=1 // pred_check_branch
      %143 = sbr.rel (0) target = $region25
    $region24: #{forward.1} parent=1 // pred_region
      _
    $region25: #{forward.1} parent=1 // pred_fallthru
      _
    %144 = vsyncpa [#allocation3], 1

</llo_original>
